<compile_context>
chip_gen: v6e
topology: v6e:2x2x1
jax: 0.10.0
libtpu: 0.0.40
codegen_flags: <defaults>
</compile_context>

<pallas_src>
import jax
import jax.numpy as jnp
from jax.experimental import pallas as pl
from jax.experimental.pallas import tpu as pltpu


def _where_kernel(x_ref, o_ref):
    x = x_ref[...]
    # torch.where(x >= 0.0, 3.0, 5.0): for integer (and float) x this is
    # equivalent to comparing against zero in x's own dtype — no cast needed.
    o_ref[...] = jnp.where(x >= 0, jnp.float32(3.0), jnp.float32(5.0))


def my_model_forward(x):
    """Pallas equivalent of MyModel.forward. Returns a list with one array."""
    out = pl.pallas_call(
        _where_kernel,
        out_shape=jax.ShapeDtypeStruct(x.shape, jnp.float32),
        # No grid: the (1, 64) tensor is a single block held in VMEM.
        in_specs=[pl.BlockSpec(memory_space=pltpu.MemorySpace.VMEM)],
        out_specs=pl.BlockSpec(memory_space=pltpu.MemorySpace.VMEM),
    )(x)
    return [out]


if __name__ == "__main__":
    key = jax.random.PRNGKey(0)
    # Mirror the (1, 64) integer input of `torch.randint(1, (1, 64))`, but use
    # a range with negatives so both the 3.0 and 5.0 branches are exercised,
    # and keep it int32 so the integer comparison path is what actually runs.
    x = jax.random.randint(key, (1, 64), minval=-3, maxval=3, dtype=jnp.int32)

    (out,) = my_model_forward(x)
    out = jax.block_until_ready(out)

    # Reference check in plain JAX.
    ref = jnp.where(x >= 0, 3.0, 5.0).astype(jnp.float32)
    assert out.shape == (1, 64) and out.dtype == jnp.float32
    assert bool(jnp.all(out == ref))
    # Sanity: both branches present in the test data.
    assert bool(jnp.any(out == 3.0)) and bool(jnp.any(out == 5.0))
    print("KERNEL_OK")
</pallas_src>

<mosaic_0001>
module attributes {stable_mosaic.version = 11 : i64} {
  func.func @_where_kernel(%arg0: memref<1x64xi32, #tpu.memory_space<vmem>>, %arg1: memref<1x64xf32, #tpu.memory_space<vmem>>) attributes {dimension_semantics = [], scalar_prefetch = 0 : i64, scratch_operands = 0 : i64, tpu.core_type = #tpu.core_type<tc>} {
    %c0 = arith.constant 0 : index
    %c0_0 = arith.constant 0 : index
    %0 = vector.load %arg0[%c0, %c0_0] : memref<1x64xi32, #tpu.memory_space<vmem>>, vector<1x64xi32>
    %c0_i32 = arith.constant 0 : i32
    %1 = vector.broadcast %c0_i32 : i32 to vector<1x64xi32>
    %2 = arith.cmpi sge, %0, %1 : vector<1x64xi32>
    %cst = arith.constant 3.000000e+00 : f32
    %cst_1 = arith.constant 5.000000e+00 : f32
    %3 = vector.broadcast %cst : f32 to vector<1x64xf32>
    %4 = vector.broadcast %cst_1 : f32 to vector<1x64xf32>
    %5 = arith.select %2, %3, %4 : vector<1x64xi1>, vector<1x64xf32>
    %c0_2 = arith.constant 0 : index
    %c0_3 = arith.constant 0 : index
    %6 = vector.load %arg1[%c0_2, %c0_3] : memref<1x64xf32, #tpu.memory_space<vmem>>, vector<1x64xf32>
    tpu.vector_store %arg1[%c0_2, %c0_3], %5 {strides = array<i32>} : memref<1x64xf32, #tpu.memory_space<vmem>>, vector<1x64xf32>,
    return
  }
}

</mosaic_0001>

<llo_original>
// kernel: tpu_custom_call.1
$region0: #{tpu_custom_call.1}
  #allocation0 [shape = 'u32[]', space=smem, size = 0x4, offset = 0x4, fixed_abs, tag = 'smem constant byte address 0x4 - core index']
  #allocation1 [shape = 'u32[144,128]{1,0:T(1,128)}', space=vmem, size = 0x12000, scoped, tag = 'internal scratch']
  %s0 = inlined_call_operand.hbm [shape: s32[1,64], index: 0, kind: input, shape index: {}]
  %s1 = inlined_call_operand.hbm [shape: f32[1,64], index: 1, kind: output, shape index: {}]
  %s2 = sld [smem:[#allocation0]]
  $region18: #{tpu_custom_call.1} parent=0
    _
  %s4 = ssub.s32 1, %s2
  %s5 = scalar_select 0, %s4, %s2
  $region1: #{tpu_custom_call.1} parent=0
    #allocation2 [shape = 'u8[512]{0}', space=vmem, size = 0x400, scoped, tag = 'input window, operand 0, single buffered']
    #allocation3 [shape = 's32[1]{0}', space=sflag, size = 0x4, scoped, tag = 'scoped memory for tpu_custom_call.1']
    #allocation4 [shape = 's32[1]{0}', space=sflag, size = 0x4, scoped, tag = 'scoped memory for tpu_custom_call.1']
    #allocation5 [shape = 'u8[512]{0}', space=vmem, size = 0x400, scoped, tag = 'output window, operand 0, single buffered']
    %6 = vsyncpa [#allocation3], 0
    %7 = vsyncpa [#allocation4], 0
    // Predicated region
    $region2: #{tpu_custom_call.1} parent=1 // pred_check
      _
    $region3: #{tpu_custom_call.1} parent=1 // pred_check_branch
      %9 = sbr.rel (0) target = $region5
    $region4: #{tpu_custom_call.1} parent=1 // pred_region
      %s11 = ssub.s32 16, 16
      %12 = vsyncadd [#allocation3], %s11
      %s14 = sshll.u32 [#allocation2], 4
      %s15 = int_to_ptr.vmem [resolvable:$true] %s14
      %17 = dma.hbm_to_vmem [thread:$0]  %s0, 16, %s15, [#allocation3]
    $region5: #{tpu_custom_call.1} parent=1 // pred_fallthru
      _
    // Predicated region
    $region6: #{tpu_custom_call.1} parent=1 // pred_check
      _
    $region7: #{tpu_custom_call.1} parent=1 // pred_check_branch
      %19 = sbr.rel (0) target = $region9
    $region8: #{tpu_custom_call.1} parent=1 // pred_region
      %20 = dma.done [#allocation3], 16
    $region9: #{tpu_custom_call.1} parent=1 // pred_fallthru
      _
    %v21 = vld [vmem:[#allocation2] sm:$0x1]
    %vm22 = vcmp.ge.s32.totalorder %v21, 0
    %v23 = vsel %vm22, 3.0, 5.0
    %vm24 = vcmask 516096
    %25 = vst.msk [vmem:[#allocation5] sm:$0x1] %vm24, %v23
    // Predicated region
    $region10: #{tpu_custom_call.1} parent=1 // pred_check
      _
    $region11: #{tpu_custom_call.1} parent=1 // pred_check_branch
      %27 = sbr.rel (0) target = $region13
    $region12: #{tpu_custom_call.1} parent=1 // pred_region
      %s29 = ssub.s32 16, 16
      %30 = vsyncadd [#allocation4], %s29
      %s32 = sshll.u32 [#allocation5], 4
      %s33 = int_to_ptr.vmem [resolvable:$true] %s32
      %35 = dma.vmem_to_hbm [thread:$0]  %s33, 16, %s1, [#allocation4]
    $region13: #{tpu_custom_call.1} parent=1 // pred_fallthru
      _
    // Predicated region
    $region14: #{tpu_custom_call.1} parent=1 // pred_check
      _
    $region15: #{tpu_custom_call.1} parent=1 // pred_check_branch
      %37 = sbr.rel (0) target = $region17
    $region16: #{tpu_custom_call.1} parent=1 // pred_region
      %38 = dma.done [#allocation4], 16
    $region17: #{tpu_custom_call.1} parent=1 // pred_fallthru
      _
    %39 = vsyncpa [#allocation3], 1
    %40 = vsyncpa [#allocation4], 1

</llo_original>
